<compile_context>
chip_gen: v5e
topology: v5e:2x2
jax: 0.10.0
libtpu: 0.0.40
codegen_flags: <defaults>
</compile_context>

<pallas_src>
import jax
import jax.numpy as jnp
from jax.experimental import pallas as pl
from jax.experimental.pallas import tpu as pltpu


# ----------------------------- Pallas kernel ------------------------------ #
def graphsst2_kernel(idx_ref, ew_ref, x_ref, w0s_ref, w1s_ref, mw1_ref, mw2_ref,
                     bias_ref, out_ref):
    f32 = jnp.float32
    bf16 = jnp.bfloat16

    N, F = x_ref.shape
    E = ew_ref.shape[1]
    G, C = out_ref.shape
    H = w1s_ref.shape[1]

    # Unpack the int32 index slab (src / dst / batch packed as rows -> one DMA).
    src_row = idx_ref[0:1, :E]                                          # [1, E]
    dst_row = idx_ref[1:2, :E]                                          # [1, E]
    batch_row = idx_ref[2:3, :N]                                        # [1, N]

    # ---- One-hot operators built in VMEM (no XLA scatter, no HBM adjacency). ----
    node_vs_edge = jax.lax.broadcasted_iota(jnp.int32, (N, E), 0)       # node id per row
    dst_oh = (node_vs_edge == dst_row).astype(f32)                      # [N, E]
    src_oh_bf = (node_vs_edge == src_row).astype(bf16)                  # [N, E] (exact in bf16)

    # ---- GCN symmetric norm (add_self_loops=False); degree/rsqrt stay in f32. ----
    ew_row = ew_ref[...]                                                # [1, E] f32
    wdst = dst_oh * ew_row                                              # [N, E] weighted scatter
    deg = jnp.sum(wdst, axis=-1, keepdims=True)                         # [N, 1] f32 (XLU reduce)
    dinv = jnp.where(deg > 0.0, jax.lax.rsqrt(deg), 0.0)                # [N, 1] f32

    # Weighted adjacency A_w[t, s] = sum_e ew_e*[dst_e==t]*[src_e==s]; bf16 operands, f32 acc.
    a_w = jnp.dot(wdst.astype(bf16), src_oh_bf.T, preferred_element_type=f32)    # [N, N]
    a_w_bf = a_w.astype(bf16)

    # Normalized propagation without materializing D^-1/2 A D^-1/2:
    #   A_hat @ v == dinv * (A_w @ (dinv * v))        (row scalings stay f32 on the VPU)
    def prop(v):
        return dinv * jnp.dot(a_w_bf, (dinv * v).astype(bf16), preferred_element_type=f32)

    # ---- ARMA conv #1 (fused): ReLU( [A_hat@x, x] @ [Wi0 ; Wr0] + b0 ) ----
    x_f = x_ref[...].astype(f32)
    ax = prop(x_f)                                                      # [N, F]
    cat0 = jnp.concatenate([ax.astype(bf16), x_f.astype(bf16)], axis=-1)        # [N, 2F]
    h = jnp.dot(cat0, w0s_ref[...], preferred_element_type=f32) + bias_ref[:, 0:H]
    h = jnp.maximum(h, 0.0)     # ARMA act; the model's extra F.relu is a no-op (dropped)

    # ---- ARMA conv #2 (fused): ReLU( [A_hat@h, h] @ [Wi1 ; Wr1] + b1 ) ----
    ah = prop(h)                                                        # [N, H]
    cat1 = jnp.concatenate([ah.astype(bf16), h.astype(bf16)], axis=-1)  # [N, 2H]
    h2 = jnp.dot(cat1, w1s_ref[...], preferred_element_type=f32) + bias_ref[:, H:2 * H]
    h2 = jnp.maximum(h2, 0.0)

    # ---- global_mean_pool as one-hot matmul; EUP reciprocal instead of VPU divide ----
    graph_vs_node = jax.lax.broadcasted_iota(jnp.int32, (G, N), 0)      # [G, N]
    pool = (graph_vs_node == batch_row).astype(f32)                     # [G, N]
    counts = jnp.sum(pool, axis=-1, keepdims=True)                      # [G, 1]
    inv_counts = pl.reciprocal(jnp.maximum(counts, 1.0), approx=True)   # [G, 1]
    gsum = jnp.dot(pool.astype(bf16), h2.astype(bf16), preferred_element_type=f32)   # [G, H]
    gx = gsum * inv_counts

    # ---- causal MLP: Linear(H, 2H) -> ReLU -> Linear(2H, C) ----
    z = (jnp.dot(gx.astype(bf16), mw1_ref[...], preferred_element_type=f32)
         + bias_ref[:, 2 * H:4 * H])
    z = jnp.maximum(z, 0.0)
    out_ref[...] = (jnp.dot(z.astype(bf16), mw2_ref[...], preferred_element_type=f32)
                    + bias_ref[:, 4 * H:4 * H + C])


# ----------------------------- wrapper (jit-ed) ---------------------------- #
def _vmem_limit_bytes():
    """Generation-aware VMEM limit (v5e/v6e: up to ~100 MiB; v7x: capped below 64 MiB)."""
    default = 64 * 1024 * 1024
    try:
        cap = int(getattr(pltpu.get_tpu_info(), "vmem_capacity_bytes", default))
    except Exception:
        cap = default
    return max(32 * 1024 * 1024, min(cap - 16 * 1024 * 1024, 100 * 1024 * 1024))


def graphsst2_forward(x, edge_index, edge_attr, batch, packed, num_graphs):
    """Thin glue: pack the tiny per-call index/edge-weight slabs, then one pallas_call."""
    N = x.shape[0]
    E = edge_index.shape[1]
    H = packed["w1s"].shape[1]
    C = packed["bias"].shape[1] - 4 * H

    # Pack src / dst / batch into one int32 slab -> one DMA instead of three.
    L = max(E, N)

    def _pad(v):
        v = v.astype(jnp.int32)
        if v.shape[0] == L:
            return v
        return jnp.concatenate([v, jnp.full((L - v.shape[0],), -1, jnp.int32)])

    idx = jnp.stack([_pad(edge_index[0]), _pad(edge_index[1]), _pad(batch)], axis=0)  # [3, L]
    ew = edge_attr.reshape(1, E).astype(jnp.float32)            # edge_attr.view(-1)
    x_f = x.astype(jnp.float32)

    inputs = (idx, ew, x_f,
              packed["w0s"], packed["w1s"], packed["mw1"], packed["mw2"], packed["bias"])

    vmem_spec = pl.BlockSpec(memory_space=pltpu.MemorySpace.VMEM)
    out = pl.pallas_call(
        graphsst2_kernel,
        out_shape=jax.ShapeDtypeStruct((num_graphs, C), jnp.float32),
        in_specs=[vmem_spec] * len(inputs),
        out_specs=vmem_spec,
        compiler_params=pltpu.CompilerParams(vmem_limit_bytes=_vmem_limit_bytes()),
    )(*inputs)
    return out


def init_params(key, in_channels, hid_channels, num_classes):
    ks = jax.random.split(key, 8)

    def glorot(k, shape):
        fan_in, fan_out = shape[0], shape[-1]
        lim = (6.0 / (fan_in + fan_out)) ** 0.5
        return jax.random.uniform(k, shape, jnp.float32, -lim, lim)

    return {
        # ARMAConv(in_channels, hid): init_weight, root_weight, bias
        "wi0": glorot(ks[0], (in_channels, hid_channels)),
        "wr0": glorot(ks[1], (in_channels, hid_channels)),
        "b0": jnp.zeros((1, hid_channels), jnp.float32),
        # ARMAConv(hid, hid, num_layers=1)
        "wi1": glorot(ks[2], (hid_channels, hid_channels)),
        "wr1": glorot(ks[3], (hid_channels, hid_channels)),
        "b1": jnp.zeros((1, hid_channels), jnp.float32),
        # causal_mlp: Linear(H, 2H) -> ReLU -> Linear(2H, C)
        "mlp_w1": glorot(ks[4], (hid_channels, 2 * hid_channels)),
        "mlp_b1": jnp.zeros((1, 2 * hid_channels), jnp.float32),
        "mlp_w2": glorot(ks[5], (2 * hid_channels, num_classes)),
        "mlp_b2": jnp.zeros((1, num_classes), jnp.float32),
    }


def pack_params(p):
    """One-time weight stacking / bf16 casting / bias packing (hoisted out of the forward)."""
    return {
        "w0s": jnp.concatenate([p["wi0"], p["wr0"]], axis=0).astype(jnp.bfloat16),   # [2F, H]
        "w1s": jnp.concatenate([p["wi1"], p["wr1"]], axis=0).astype(jnp.bfloat16),   # [2H, H]
        "mw1": p["mlp_w1"].astype(jnp.bfloat16),                                     # [H, 2H]
        "mw2": p["mlp_w2"].astype(jnp.bfloat16),                                     # [2H, C]
        "bias": jnp.concatenate([p["b0"], p["b1"], p["mlp_b1"], p["mlp_b2"]],
                                axis=1).astype(jnp.float32),                          # [1, 4H+C]
    }


# Pure-JAX f32 reference (PyG ARMAConv / global_mean_pool semantics) for a sanity check.
def reference_forward(x, edge_index, edge_attr, batch, p, num_graphs):
    src, dst = edge_index[0], edge_index[1]
    ew = edge_attr.reshape(-1)
    N = x.shape[0]
    deg = jnp.zeros((N,), jnp.float32).at[dst].add(ew)
    dinv = jnp.where(deg > 0, 1.0 / jnp.sqrt(deg), 0.0)
    norm = dinv[src] * ew * dinv[dst]

    def prop(v):
        return jnp.zeros((N, v.shape[1]), jnp.float32).at[dst].add(v[src] * norm[:, None])

    h = jax.nn.relu(prop(x @ p["wi0"]) + x @ p["wr0"] + p["b0"])
    h2 = jax.nn.relu(prop(h @ p["wi1"]) + h @ p["wr1"] + p["b1"])
    pool = (batch[None, :] == jnp.arange(num_graphs)[:, None]).astype(jnp.float32)
    gx = (pool @ h2) / jnp.maximum(pool.sum(-1, keepdims=True), 1.0)
    z = jax.nn.relu(gx @ p["mlp_w1"] + p["mlp_b1"])
    return z @ p["mlp_w2"] + p["mlp_b2"]


if __name__ == "__main__":
    key = jax.random.PRNGKey(0)
    k_x, k_e, k_p = jax.random.split(key, 3)

    N, E = 16, 32                        # nodes, edges
    IN_CH, HID, NUM_CLASSES = 8, 128, 2  # HID=128 = module default (lane-dense)
    NUM_GRAPHS = 2

    # Node features.
    x = jax.random.normal(k_x, (N, IN_CH), jnp.float32)

    # Deterministic edge list (source, target) staying within each graph's node block.
    src = jnp.concatenate([jnp.arange(16) % 8, jnp.arange(16) % 8 + 8]).astype(jnp.int32)
    dst = jnp.concatenate([(jnp.arange(16) + 3) % 8, (jnp.arange(16) + 3) % 8 + 8]).astype(jnp.int32)
    edge_index = jnp.stack([src, dst], axis=0)               # [2, E]
    edge_attr = jax.random.uniform(k_e, (E, 1), jnp.float32, 0.1, 1.0)

    # Graph assignment: first 8 nodes -> graph 0, last 8 -> graph 1.
    batch = jnp.concatenate([jnp.zeros((8,), jnp.int32), jnp.ones((8,), jnp.int32)])

    params = init_params(k_p, IN_CH, HID, NUM_CLASSES)
    packed = pack_params(params)

    fwd = jax.jit(graphsst2_forward, static_argnums=(5,))
    out = fwd(x, edge_index, edge_attr, batch, packed, NUM_GRAPHS)
    out = jax.block_until_ready(out)

    assert out.shape == (NUM_GRAPHS, NUM_CLASSES)
    assert bool(jnp.all(jnp.isfinite(out)))

    ref = reference_forward(x, edge_index, edge_attr, batch, params, NUM_GRAPHS)
    err = float(jnp.max(jnp.abs(out - ref)))
    assert err < 1e-1, f"kernel vs f32 reference max abs err {err}"   # bf16 matmul tolerance

    print("KERNEL_OK")
</pallas_src>

<mosaic_0001>
module attributes {stable_mosaic.version = 11 : i64} {
  func.func @graphsst2_kernel(%arg0: memref<3x32xi32, #tpu.memory_space<vmem>>, %arg1: memref<1x32xf32, #tpu.memory_space<vmem>>, %arg2: memref<16x8xf32, #tpu.memory_space<vmem>>, %arg3: memref<16x128xbf16, #tpu.memory_space<vmem>>, %arg4: memref<256x128xbf16, #tpu.memory_space<vmem>>, %arg5: memref<128x256xbf16, #tpu.memory_space<vmem>>, %arg6: memref<256x2xbf16, #tpu.memory_space<vmem>>, %arg7: memref<1x514xf32, #tpu.memory_space<vmem>>, %arg8: memref<2x2xf32, #tpu.memory_space<vmem>>) attributes {dimension_semantics = [], scalar_prefetch = 0 : i64, scratch_operands = 0 : i64, tpu.core_type = #tpu.core_type<tc>} {
    %c0 = arith.constant 0 : index
    %c0_0 = arith.constant 0 : index
    %0 = vector.load %arg0[%c0, %c0_0] : memref<3x32xi32, #tpu.memory_space<vmem>>, vector<1x32xi32>
    %c1 = arith.constant 1 : index
    %c0_1 = arith.constant 0 : index
    %1 = vector.load %arg0[%c1, %c0_1] : memref<3x32xi32, #tpu.memory_space<vmem>>, vector<1x32xi32>
    %c2 = arith.constant 2 : index
    %c0_2 = arith.constant 0 : index
    %2 = vector.load %arg0[%c2, %c0_2] : memref<3x32xi32, #tpu.memory_space<vmem>>, vector<1x16xi32>
    %3 = tpu.iota {dimensions = array<i32: 0>} : vector<16x32xi32>
    %4 = vector.broadcast %1 : vector<1x32xi32> to vector<16x32xi32>
    %5 = arith.cmpi eq, %3, %4 : vector<16x32xi32>
    %6 = arith.extui %5 : vector<16x32xi1> to vector<16x32xi32>
    %7 = arith.sitofp %6 : vector<16x32xi32> to vector<16x32xf32>
    %8 = vector.broadcast %0 : vector<1x32xi32> to vector<16x32xi32>
    %9 = arith.cmpi eq, %3, %8 : vector<16x32xi32>
    %10 = arith.extui %9 : vector<16x32xi1> to vector<16x32xi32>
    %11 = arith.sitofp %10 : vector<16x32xi32> to vector<16x32xf32>
    %12 = arith.truncf %11 : vector<16x32xf32> to vector<16x32xbf16>
    %c0_3 = arith.constant 0 : index
    %c0_4 = arith.constant 0 : index
    %13 = vector.load %arg1[%c0_3, %c0_4] : memref<1x32xf32, #tpu.memory_space<vmem>>, vector<1x32xf32>
    %14 = vector.broadcast %13 : vector<1x32xf32> to vector<16x32xf32>
    %15 = arith.mulf %7, %14 : vector<16x32xf32>
    %cst = arith.constant dense<0.000000e+00> : vector<16xf32>
    %16 = vector.multi_reduction <add>, %15, %cst [1] : vector<16x32xf32> to vector<16xf32>
    %17 = vector.shape_cast %16 : vector<16xf32> to vector<16x1xf32>
    %cst_5 = arith.constant 0.000000e+00 : f32
    %18 = vector.broadcast %cst_5 : f32 to vector<16x1xf32>
    %19 = arith.cmpf ogt, %17, %18 : vector<16x1xf32>
    %20 = math.rsqrt %17 : vector<16x1xf32>
    %cst_6 = arith.constant 0.000000e+00 : f32
    %21 = vector.broadcast %cst_6 : f32 to vector<16x1xf32>
    %22 = arith.select %19, %20, %21 : vector<16x1xi1>, vector<16x1xf32>
    %23 = arith.truncf %15 : vector<16x32xf32> to vector<16x32xbf16>
    %24 = tpu.transpose %12, [1, 0] : vector<16x32xbf16> -> vector<32x16xbf16>
    %cst_7 = arith.constant dense<0.000000e+00> : vector<16x16xf32>
    %25 = tpu.matmul %23, %24, %cst_7 {dimension_numbers = #tpu.dot_dimension_numbers<[1], [0], [0], [1], [0, 0, 1, 1], [], []>} : vector<16x32xbf16>, vector<32x16xbf16>, vector<16x16xf32> -> vector<16x16xf32>
    %26 = arith.truncf %25 : vector<16x16xf32> to vector<16x16xbf16>
    %c0_8 = arith.constant 0 : index
    %c0_9 = arith.constant 0 : index
    %27 = vector.load %arg2[%c0_8, %c0_9] : memref<16x8xf32, #tpu.memory_space<vmem>>, vector<16x8xf32>
    %28 = vector.broadcast %22 : vector<16x1xf32> to vector<16x8xf32>
    %29 = arith.mulf %28, %27 : vector<16x8xf32>
    %30 = arith.truncf %29 : vector<16x8xf32> to vector<16x8xbf16>
    %cst_10 = arith.constant dense<0.000000e+00> : vector<16x8xf32>
    %31 = tpu.matmul %26, %30, %cst_10 {dimension_numbers = #tpu.dot_dimension_numbers<[1], [0], [0], [1], [0, 0, 1, 1], [], []>} : vector<16x16xbf16>, vector<16x8xbf16>, vector<16x8xf32> -> vector<16x8xf32>
    %32 = vector.broadcast %22 : vector<16x1xf32> to vector<16x8xf32>
    %33 = arith.mulf %32, %31 : vector<16x8xf32>
    %34 = arith.truncf %33 : vector<16x8xf32> to vector<16x8xbf16>
    %35 = arith.truncf %27 : vector<16x8xf32> to vector<16x8xbf16>
    %36 = tpu.concatenate %34, %35 in 1 : vector<16x8xbf16>, vector<16x8xbf16> -> vector<16x16xbf16>
    %c0_11 = arith.constant 0 : index
    %c0_12 = arith.constant 0 : index
    %37 = vector.load %arg3[%c0_11, %c0_12] : memref<16x128xbf16, #tpu.memory_space<vmem>>, vector<16x128xbf16>
    %cst_13 = arith.constant dense<0.000000e+00> : vector<16x128xf32>
    %38 = tpu.matmul %36, %37, %cst_13 {dimension_numbers = #tpu.dot_dimension_numbers<[1], [0], [0], [1], [0, 0, 1, 1], [], []>} : vector<16x16xbf16>, vector<16x128xbf16>, vector<16x128xf32> -> vector<16x128xf32>
    %c0_14 = arith.constant 0 : index
    %c0_15 = arith.constant 0 : index
    %39 = vector.load %arg7[%c0_14, %c0_15] : memref<1x514xf32, #tpu.memory_space<vmem>>, vector<1x128xf32>
    %40 = vector.broadcast %39 : vector<1x128xf32> to vector<16x128xf32>
    %41 = arith.addf %38, %40 : vector<16x128xf32>
    %cst_16 = arith.constant 0.000000e+00 : f32
    %42 = vector.broadcast %cst_16 : f32 to vector<16x128xf32>
    %43 = arith.maximumf %41, %42 : vector<16x128xf32>
    %44 = vector.broadcast %22 : vector<16x1xf32> to vector<16x128xf32>
    %45 = arith.mulf %44, %43 : vector<16x128xf32>
    %46 = arith.truncf %45 : vector<16x128xf32> to vector<16x128xbf16>
    %cst_17 = arith.constant dense<0.000000e+00> : vector<16x128xf32>
    %47 = tpu.matmul %26, %46, %cst_17 {dimension_numbers = #tpu.dot_dimension_numbers<[1], [0], [0], [1], [0, 0, 1, 1], [], []>} : vector<16x16xbf16>, vector<16x128xbf16>, vector<16x128xf32> -> vector<16x128xf32>
    %48 = vector.broadcast %22 : vector<16x1xf32> to vector<16x128xf32>
    %49 = arith.mulf %48, %47 : vector<16x128xf32>
    %50 = arith.truncf %49 : vector<16x128xf32> to vector<16x128xbf16>
    %51 = arith.truncf %43 : vector<16x128xf32> to vector<16x128xbf16>
    %52 = tpu.concatenate %50, %51 in 1 : vector<16x128xbf16>, vector<16x128xbf16> -> vector<16x256xbf16>
    %c0_18 = arith.constant 0 : index
    %c0_19 = arith.constant 0 : index
    %53 = vector.load %arg4[%c0_18, %c0_19] : memref<256x128xbf16, #tpu.memory_space<vmem>>, vector<256x128xbf16>
    %cst_20 = arith.constant dense<0.000000e+00> : vector<16x128xf32>
    %54 = tpu.matmul %52, %53, %cst_20 {dimension_numbers = #tpu.dot_dimension_numbers<[1], [0], [0], [1], [0, 0, 1, 1], [], []>} : vector<16x256xbf16>, vector<256x128xbf16>, vector<16x128xf32> -> vector<16x128xf32>
    %c0_21 = arith.constant 0 : index
    %c128 = arith.constant 128 : index
    %55 = vector.load %arg7[%c0_21, %c128] : memref<1x514xf32, #tpu.memory_space<vmem>>, vector<1x128xf32>
    %56 = vector.broadcast %55 : vector<1x128xf32> to vector<16x128xf32>
    %57 = arith.addf %54, %56 : vector<16x128xf32>
    %cst_22 = arith.constant 0.000000e+00 : f32
    %58 = vector.broadcast %cst_22 : f32 to vector<16x128xf32>
    %59 = arith.maximumf %57, %58 : vector<16x128xf32>
    %60 = tpu.iota {dimensions = array<i32: 0>} : vector<2x16xi32>
    %61 = vector.broadcast %2 : vector<1x16xi32> to vector<2x16xi32>
    %62 = arith.cmpi eq, %60, %61 : vector<2x16xi32>
    %63 = arith.extui %62 : vector<2x16xi1> to vector<2x16xi32>
    %64 = arith.sitofp %63 : vector<2x16xi32> to vector<2x16xf32>
    %cst_23 = arith.constant dense<0.000000e+00> : vector<2xf32>
    %65 = vector.multi_reduction <add>, %64, %cst_23 [1] : vector<2x16xf32> to vector<2xf32>
    %66 = vector.shape_cast %65 : vector<2xf32> to vector<2x1xf32>
    %cst_24 = arith.constant 1.000000e+00 : f32
    %67 = vector.broadcast %cst_24 : f32 to vector<2x1xf32>
    %68 = arith.maximumf %66, %67 : vector<2x1xf32>
    %69 = tpu.reciprocal %68 {approx = true} : vector<2x1xf32> -> vector<2x1xf32>
    %70 = arith.truncf %64 : vector<2x16xf32> to vector<2x16xbf16>
    %71 = arith.truncf %59 : vector<16x128xf32> to vector<16x128xbf16>
    %cst_25 = arith.constant dense<0.000000e+00> : vector<2x128xf32>
    %72 = tpu.matmul %70, %71, %cst_25 {dimension_numbers = #tpu.dot_dimension_numbers<[1], [0], [0], [1], [0, 0, 1, 1], [], []>} : vector<2x16xbf16>, vector<16x128xbf16>, vector<2x128xf32> -> vector<2x128xf32>
    %73 = vector.broadcast %69 : vector<2x1xf32> to vector<2x128xf32>
    %74 = arith.mulf %72, %73 : vector<2x128xf32>
    %75 = arith.truncf %74 : vector<2x128xf32> to vector<2x128xbf16>
    %c0_26 = arith.constant 0 : index
    %c0_27 = arith.constant 0 : index
    %76 = vector.load %arg5[%c0_26, %c0_27] : memref<128x256xbf16, #tpu.memory_space<vmem>>, vector<128x256xbf16>
    %cst_28 = arith.constant dense<0.000000e+00> : vector<2x256xf32>
    %77 = tpu.matmul %75, %76, %cst_28 {dimension_numbers = #tpu.dot_dimension_numbers<[1], [0], [0], [1], [0, 0, 1, 1], [], []>} : vector<2x128xbf16>, vector<128x256xbf16>, vector<2x256xf32> -> vector<2x256xf32>
    %c0_29 = arith.constant 0 : index
    %c256 = arith.constant 256 : index
    %78 = vector.load %arg7[%c0_29, %c256] : memref<1x514xf32, #tpu.memory_space<vmem>>, vector<1x256xf32>
    %79 = vector.broadcast %78 : vector<1x256xf32> to vector<2x256xf32>
    %80 = arith.addf %77, %79 : vector<2x256xf32>
    %cst_30 = arith.constant 0.000000e+00 : f32
    %81 = vector.broadcast %cst_30 : f32 to vector<2x256xf32>
    %82 = arith.maximumf %80, %81 : vector<2x256xf32>
    %83 = arith.truncf %82 : vector<2x256xf32> to vector<2x256xbf16>
    %c0_31 = arith.constant 0 : index
    %c0_32 = arith.constant 0 : index
    %84 = vector.load %arg6[%c0_31, %c0_32] : memref<256x2xbf16, #tpu.memory_space<vmem>>, vector<256x2xbf16>
    %cst_33 = arith.constant dense<0.000000e+00> : vector<2x2xf32>
    %85 = tpu.matmul %83, %84, %cst_33 {dimension_numbers = #tpu.dot_dimension_numbers<[1], [0], [0], [1], [0, 0, 1, 1], [], []>} : vector<2x256xbf16>, vector<256x2xbf16>, vector<2x2xf32> -> vector<2x2xf32>
    %c0_34 = arith.constant 0 : index
    %c512 = arith.constant 512 : index
    %86 = vector.load %arg7[%c0_34, %c512] : memref<1x514xf32, #tpu.memory_space<vmem>>, vector<1x2xf32>
    %87 = vector.broadcast %86 : vector<1x2xf32> to vector<2x2xf32>
    %88 = arith.addf %85, %87 : vector<2x2xf32>
    %c0_35 = arith.constant 0 : index
    %c0_36 = arith.constant 0 : index
    %89 = vector.load %arg8[%c0_35, %c0_36] : memref<2x2xf32, #tpu.memory_space<vmem>>, vector<2x2xf32>
    tpu.vector_store %arg8[%c0_35, %c0_36], %88 {strides = array<i32>} : memref<2x2xf32, #tpu.memory_space<vmem>>, vector<2x2xf32>,
    return
  }
}

</mosaic_0001>

<llo_original>
// kernel: graphsst2_forward.1
$region0: #{graphsst2_forward.1}
  #allocation0 [shape = 'u32[]', space=smem, size = 0x4, offset = 0x4, fixed_abs, tag = 'smem constant byte address 0x4 - core index']
  #allocation1 [shape = 'u32[72,128]{1,0:T(1,128)}', space=vmem, size = 0x9000, scoped, tag = 'internal scratch']
  %s0 = inlined_call_operand.vmem [shape: s32[3,32], index: 0, kind: input, shape index: {}]
  %s1 = inlined_call_operand.vmem [shape: f32[1,32], index: 1, kind: input, shape index: {}]
  %s2 = inlined_call_operand.vmem [shape: f32[16,8], index: 2, kind: input, shape index: {}]
  %s3 = inlined_call_operand.vmem [shape: bf16[16,128], index: 3, kind: input, shape index: {}]
  %s4 = inlined_call_operand.vmem [shape: bf16[256,128], index: 4, kind: input, shape index: {}]
  %s5 = inlined_call_operand.hbm [shape: bf16[128,256], index: 5, kind: input, shape index: {}]
  %s6 = inlined_call_operand.vmem [shape: bf16[256,2], index: 6, kind: input, shape index: {}]
  %s7 = inlined_call_operand.vmem [shape: f32[1,514], index: 7, kind: input, shape index: {}]
  %s8 = inlined_call_operand.hbm [shape: f32[2,2], index: 8, kind: output, shape index: {}]
  %s9 = sld [smem:[#allocation0]]
  $region46: #{graphsst2_forward.1} parent=0
    _
  %s11 = ssub.s32 1, %s9
  %s12 = scalar_select 0, %s11, %s9
  $region1: #{graphsst2_forward.1} parent=0
    #allocation2 [shape = 'u8[65536]{0}', space=vmem, size = 0x10000, scoped, tag = 'input window, operand 5, single buffered']
    #allocation3 [shape = 's32[1]{0}', space=sflag, size = 0x4, scoped, tag = 'scoped memory for graphsst2_forward.1']
    #allocation4 [shape = 's32[1]{0}', space=sflag, size = 0x4, scoped, tag = 'scoped memory for graphsst2_forward.1']
    #allocation5 [shape = 'u8[1024]{0}', space=vmem, size = 0x400, scoped, tag = 'output window, operand 0, single buffered']
    %13 = vsyncpa [#allocation3], 0
    %14 = vsyncpa [#allocation4], 0
    // Predicated region
    $region2: #{graphsst2_forward.1} parent=1 // pred_check
      _
    $region3: #{graphsst2_forward.1} parent=1 // pred_check_branch
      %16 = sbr.rel (0) target = $region5
    $region4: #{graphsst2_forward.1} parent=1 // pred_region
      _
    $region5: #{graphsst2_forward.1} parent=1 // pred_fallthru
      _
    // Predicated region
    $region6: #{graphsst2_forward.1} parent=1 // pred_check
      _
    $region7: #{graphsst2_forward.1} parent=1 // pred_check_branch
      %18 = sbr.rel (0) target = $region9
    $region8: #{graphsst2_forward.1} parent=1 // pred_region
      _
    $region9: #{graphsst2_forward.1} parent=1 // pred_fallthru
      _
    // Predicated region
    $region10: #{graphsst2_forward.1} parent=1 // pred_check
      _
    $region11: #{graphsst2_forward.1} parent=1 // pred_check_branch
      %20 = sbr.rel (0) target = $region13
    $region12: #{graphsst2_forward.1} parent=1 // pred_region
      _
    $region13: #{graphsst2_forward.1} parent=1 // pred_fallthru
      _
    // Predicated region
    $region14: #{graphsst2_forward.1} parent=1 // pred_check
      _
    $region15: #{graphsst2_forward.1} parent=1 // pred_check_branch
      %22 = sbr.rel (0) target = $region17
    $region16: #{graphsst2_forward.1} parent=1 // pred_region
      _
    $region17: #{graphsst2_forward.1} parent=1 // pred_fallthru
      _
    // Predicated region
    $region18: #{graphsst2_forward.1} parent=1 // pred_check
      _
    $region19: #{graphsst2_forward.1} parent=1 // pred_check_branch
      %24 = sbr.rel (0) target = $region21
    $region20: #{graphsst2_forward.1} parent=1 // pred_region
      _
    $region21: #{graphsst2_forward.1} parent=1 // pred_fallthru
      _
    // Predicated region
    $region22: #{graphsst2_forward.1} parent=1 // pred_check
      _
    $region23: #{graphsst2_forward.1} parent=1 // pred_check_branch
      %26 = sbr.rel (0) target = $region25
    $region24: #{graphsst2_forward.1} parent=1 // pred_region
      %28 = vsyncadd [#allocation3], 0
      %s29 = sshll.u32 %s5, 4
      %s30 = int_to_ptr.hbm [resolvable:$true] %s29
      %s31 = sshll.u32 [#allocation2], 4
      %s32 = int_to_ptr.vmem [resolvable:$true] %s31
      %37 = dma.hbm_to_vmem [thread:$0]  %s30, 2048, %s32, [#allocation3], 128, 128, 8
    $region25: #{graphsst2_forward.1} parent=1 // pred_fallthru
      _
    // Predicated region
    $region26: #{graphsst2_forward.1} parent=1 // pred_check
      _
    $region27: #{graphsst2_forward.1} parent=1 // pred_check_branch
      %39 = sbr.rel (0) target = $region29
    $region28: #{graphsst2_forward.1} parent=1 // pred_region
      _
    $region29: #{graphsst2_forward.1} parent=1 // pred_fallthru
      _
    // Predicated region
    $region30: #{graphsst2_forward.1} parent=1 // pred_check
      _
    $region31: #{graphsst2_forward.1} parent=1 // pred_check_branch
      %41 = sbr.rel (0) target = $region33
    $region32: #{graphsst2_forward.1} parent=1 // pred_region
      _
    $region33: #{graphsst2_forward.1} parent=1 // pred_fallthru
      _
    // Predicated region
    $region34: #{graphsst2_forward.1} parent=1 // pred_check
      _
    $region35: #{graphsst2_forward.1} parent=1 // pred_check_branch
      %43 = sbr.rel (0) target = $region37
    $region36: #{graphsst2_forward.1} parent=1 // pred_region
      %45 = dma.done [#allocation3], 2048
    $region37: #{graphsst2_forward.1} parent=1 // pred_fallthru
      _
    %v47 = vld [vmem:[%s0] sm:$0x1]
    %v48 = vld [vmem:[%s0 + $0x1] sm:$0x1]
    %v49 = vld [vmem:[%s0 + $0x2] sm:$0x1]
    %v50 = vlaneseq
    %v51 = vshrl.u32 %v50, 7
    %v52 = vadd.s32 %v51, 8
    %v53 = vperm.slane %v48, 0
    %vm54 = vcmp.eq.s32.totalorder %v51, %v53
    %vm55 = vcmp.eq.s32.totalorder %v52, %v53
    %v56 = vsel %vm54, 1, 0
    %v57 = vsel %vm55, 1, 0
    %v58 = vcvt.s32.f32 %v56
    %v59 = vcvt.s32.f32 %v57
    %v60 = vperm.slane %v47, 0
    %vm61 = vcmp.eq.s32.totalorder %v51, %v60
    %vm62 = vcmp.eq.s32.totalorder %v52, %v60
    %v63 = vsel %vm61, 1, 0
    %v64 = vsel %vm62, 1, 0
    %v65 = vcvt.s32.f32 %v63
    %v66 = vcvt.s32.f32 %v64
    %v67 = vpack.c.bf16 %v66, %v65
    %v68 = vld [vmem:[%s1] sm:$0x1]
    %v70 = vperm.slane %v68, 0
    %v72 = vmul.f32 %v58, %v70
    %v73 = vmul.f32 %v59, %v70
    %vm74 = vcmask 261120
    %v75 = vsel %vm74, %v72, 0.0
    %76 = vadd.xlane.f32.xlu0 %v75
    %v77 = vpop.xlane.xlu0 %76
    %v78 = vsel %vm74, %v73, 0.0
    %79 = vadd.xlane.f32.xlu0 %v78
    %v80 = vpop.xlane.xlu0 %79
    %vm81 = vcmp.gt.f32.partialorder %v77, 0.0
    %vm82 = vcmp.gt.f32.partialorder %v80, 0.0
    %v83 = vrsqrt.pop %v77
    %v84 = vmul.f32 %v83, %v77
    %v85 = vmul.f32 %v84, %v83
    %v86 = vmul.f32 0.5, %v85
    %v87 = vsub.f32 1.5, %v86
    %v88 = vmul.f32 %v83, %v87
    %vm89 = vweird.f32 %v77
    %vm90 = vweird.f32 %v83
    %vm91 = vmor %vm89, %vm90
    %v92 = vsel %vm91, %v83, %v88
    %v93 = vrsqrt.pop %v80
    %v94 = vmul.f32 %v93, %v80
    %v95 = vmul.f32 %v94, %v93
    %v96 = vmul.f32 0.5, %v95
    %v97 = vsub.f32 1.5, %v96
    %v98 = vmul.f32 %v93, %v97
    %vm99 = vweird.f32 %v80
    %vm100 = vweird.f32 %v93
    %vm101 = vmor %vm99, %vm100
    %v102 = vsel %vm101, %v93, %v98
    %v103 = vsel %vm81, %v92, 0.0
    %v104 = vsel %vm82, %v102, 0.0
    %v105 = vpack.c.bf16 %v73, %v72
    %v107 = vsel %vm74, %v105, 0
    %v110 = vsel %vm74, %v67, 0
    %112 = vmatpush.bf16.xpose.msra.mxu0 0
    %113 = vmatpush.bf16.xpose.msra.mxu0 0
    %114 = vmatpush.bf16.xpose.msra.mxu0 0
    %115 = vmatpush.bf16.xpose.msra.mxu0 0
    %116 = vmatpush.bf16.xpose.msra.mxu0 0
    %117 = vmatpush.bf16.xpose.msra.mxu0 0
    %118 = vmatpush.bf16.xpose.msra.mxu0 0
    %119 = vmatpush.bf16.xpose.msra.mxu0 %v110
    %120 = vmatmul.bf16.gmra.mxu0 %v107
    %v121 = vpop.f32.mrf.mxu0
    %v122 = vadd.f32 0.0, %v121
    %v123 = vpop.f32.mrf.mxu0
    %v124 = vadd.f32 0.0, %v123
    %125 = vdwg.mxu0
    %v126 = vpack.c.bf16 %v124, %v122
    %v127 = vld [vmem:[%s2] sm:$0xff]
    %v128 = vld [vmem:[%s2 + $0x8] sm:$0xff]
    %v129 = vmul.f32 %v103, %v127
    %v130 = vmul.f32 %v104, %v128
    %v131 = vpack.c.bf16 %v130, %v129
    %vm132 = vcmask 130048
    %v134 = vsel %vm132, %v126, 0
    %136 = vmatpush.bf16.msra.mxu0 0
    %137 = vmatpush.bf16.msra.mxu0 0
    %138 = vmatpush.bf16.msra.mxu0 0
    %139 = vmatpush.bf16.msra.mxu0 0
    %140 = vmatpush.bf16.msra.mxu0 0
    %141 = vmatpush.bf16.msra.mxu0 0
    %142 = vmatpush.bf16.msra.mxu0 0
    %143 = vmatpush.bf16.msra.mxu0 %v131
    %144 = vmatmul.bf16.gmra.mxu0 %v134
    %v145 = vpop.f32.mrf.mxu0
    %v146 = vadd.f32 0.0, %v145
    %v147 = vpop.f32.mrf.mxu0
    %v148 = vadd.f32 0.0, %v147
    %149 = vdwg.mxu0
    %v150 = vmul.f32 %v103, %v146
    %v151 = vmul.f32 %v104, %v148
    %v152 = vpack.c.bf16 %v150, %v150
    %v153 = vpack.c.bf16 %v151, %v151
    %v154 = vpack.c.bf16 %v127, %v127
    %v155 = vpack.c.bf16 %v128, %v128
    %v158 = vunpack.c.l.b16 %v152
    %v159 = vunpack.c.l.b16 %v153
    %v160 = vpack.c.b16 %v159, %v158
    %v163 = vunpack.c.l.b16 %v154
    %v164 = vunpack.c.l.b16 %v155
    %v165 = vpack.c.b16 %v164, %v163
    %166 = vrot.lane.b32.xlu0 %v165, 8
    %v167 = vpop.permute.xlu0 %166
    %vm168 = vcmask 64512
    %v171 = vsel %vm168, %v160, %v167
    %v172 = vld [vmem:[%s3] sm:$0xf]
    %v173 = vld [vmem:[%s3 + $0x4] sm:$0xf]
    %v174 = vld [vmem:[%s7] sm:$0x1]
    %v176 = vperm.slane %v174, 0
    %v180 = vunpack.c.l.b16 %v172
    %v181 = vunpack.c.l.b16 %v173
    %v182 = vpack.c.b16 %v181, %v180
    %v184 = vsel %vm132, %v171, 0
    %186 = vmatpush.bf16.msra.mxu0 0
    %187 = vmatpush.bf16.msra.mxu0 0
    %188 = vmatpush.bf16.msra.mxu0 0
    %189 = vmatpush.bf16.msra.mxu0 0
    %190 = vmatpush.bf16.msra.mxu0 0
    %191 = vmatpush.bf16.msra.mxu0 0
    %192 = vmatpush.bf16.msra.mxu0 0
    %193 = vmatpush.bf16.msra.mxu0 %v182
    %194 = vmatmul.bf16.gmra.mxu0 %v184
    %v195 = vpop.f32.mrf.mxu0
    %v196 = vadd.f32 %v176, %v195
    %v197 = vpop.f32.mrf.mxu0
    %v198 = vadd.f32 %v176, %v197
    %199 = vdwg.mxu0
    %v200 = vmax.f32 %v196, 0.0
    %v201 = vmax.f32 %v198, 0.0
    %v202 = vmul.f32 %v103, %v200
    %v203 = vmul.f32 %v104, %v201
    %v204 = vpack.c.bf16 %v203, %v202
    %205 = vmatpush.bf16.msra.mxu0 0
    %206 = vmatpush.bf16.msra.mxu0 0
    %207 = vmatpush.bf16.msra.mxu0 0
    %208 = vmatpush.bf16.msra.mxu0 0
    %209 = vmatpush.bf16.msra.mxu0 0
    %210 = vmatpush.bf16.msra.mxu0 0
    %211 = vmatpush.bf16.msra.mxu0 0
    %212 = vmatpush.bf16.msra.mxu0 %v204
    %213 = vmatmul.bf16.gmra.mxu0 %v134
    %v214 = vpop.f32.mrf.mxu0
    %v215 = vadd.f32 0.0, %v214
    %v216 = vpop.f32.mrf.mxu0
    %v217 = vadd.f32 0.0, %v216
    %218 = vdwg.mxu0
    %v219 = vmul.f32 %v103, %v215
    %v220 = vmul.f32 %v104, %v217
    %v221 = vpack.c.bf16 %v219, %v219
    %v222 = vpack.c.bf16 %v220, %v220
    %v223 = vpack.c.bf16 %v200, %v200
    %v224 = vpack.c.bf16 %v201, %v201
    %v227 = vunpack.c.l.b16 %v221
    %v228 = vunpack.c.l.b16 %v222
    %v229 = vpack.c.b16 %v228, %v227
    %v233 = vunpack.c.l.b16 %v223
    %v234 = vunpack.c.l.b16 %v224
    %v235 = vpack.c.b16 %v234, %v233
    %v237 = vld [vmem:[%s4] sm:$0xf]
    %v238 = vld [vmem:[%s4 + $0x4] sm:$0xf]
    %v239 = vld [vmem:[%s4 + $0x8] sm:$0xf]
    %v240 = vld [vmem:[%s4 + $0xc] sm:$0xf]
    %v241 = vld [vmem:[%s4 + $0x10] sm:$0xf]
    %v242 = vld [vmem:[%s4 + $0x14] sm:$0xf]
    %v243 = vld [vmem:[%s4 + $0x18] sm:$0xf]
    %v244 = vld [vmem:[%s4 + $0x1c] sm:$0xf]
    %v245 = vld [vmem:[%s4 + $0x20] sm:$0xf]
    %v246 = vld [vmem:[%s4 + $0x24] sm:$0xf]
    %v247 = vld [vmem:[%s4 + $0x28] sm:$0xf]
    %v248 = vld [vmem:[%s4 + $0x2c] sm:$0xf]
    %v249 = vld [vmem:[%s4 + $0x30] sm:$0xf]
    %v250 = vld [vmem:[%s4 + $0x34] sm:$0xf]
    %v251 = vld [vmem:[%s4 + $0x38] sm:$0xf]
    %v252 = vld [vmem:[%s4 + $0x3c] sm:$0xf]
    %v253 = vld [vmem:[%s4 + $0x40] sm:$0xf]
    %v254 = vld [vmem:[%s4 + $0x44] sm:$0xf]
    %v255 = vld [vmem:[%s4 + $0x48] sm:$0xf]
    %v256 = vld [vmem:[%s4 + $0x4c] sm:$0xf]
    %v257 = vld [vmem:[%s4 + $0x50] sm:$0xf]
    %v258 = vld [vmem:[%s4 + $0x54] sm:$0xf]
    %v259 = vld [vmem:[%s4 + $0x58] sm:$0xf]
    %v260 = vld [vmem:[%s4 + $0x5c] sm:$0xf]
    %v261 = vld [vmem:[%s4 + $0x60] sm:$0xf]
    %v262 = vld [vmem:[%s4 + $0x64] sm:$0xf]
    %v263 = vld [vmem:[%s4 + $0x68] sm:$0xf]
    %v264 = vld [vmem:[%s4 + $0x6c] sm:$0xf]
    %v265 = vld [vmem:[%s4 + $0x70] sm:$0xf]
    %v266 = vld [vmem:[%s4 + $0x74] sm:$0xf]
    %v267 = vld [vmem:[%s4 + $0x78] sm:$0xf]
    %v268 = vld [vmem:[%s4 + $0x7c] sm:$0xf]
    %v269 = vld [vmem:[%s7 + $0x1] sm:$0x1]
    %v271 = vperm.slane %v269, 0
    %v305 = vunpack.c.l.b16 %v237
    %v306 = vunpack.c.l.b16 %v238
    %v307 = vunpack.c.l.b16 %v239
    %v308 = vunpack.c.l.b16 %v240
    %v309 = vunpack.c.l.b16 %v241
    %v310 = vunpack.c.l.b16 %v242
    %v311 = vunpack.c.l.b16 %v243
    %v312 = vunpack.c.l.b16 %v244
    %v313 = vunpack.c.l.b16 %v245
    %v314 = vunpack.c.l.b16 %v246
    %v315 = vunpack.c.l.b16 %v247
    %v316 = vunpack.c.l.b16 %v248
    %v317 = vunpack.c.l.b16 %v249
    %v318 = vunpack.c.l.b16 %v250
    %v319 = vunpack.c.l.b16 %v251
    %v320 = vunpack.c.l.b16 %v252
    %v321 = vunpack.c.l.b16 %v253
    %v322 = vunpack.c.l.b16 %v254
    %v323 = vunpack.c.l.b16 %v255
    %v324 = vunpack.c.l.b16 %v256
    %v325 = vunpack.c.l.b16 %v257
    %v326 = vunpack.c.l.b16 %v258
    %v327 = vunpack.c.l.b16 %v259
    %v328 = vunpack.c.l.b16 %v260
    %v329 = vunpack.c.l.b16 %v261
    %v330 = vunpack.c.l.b16 %v262
    %v331 = vunpack.c.l.b16 %v263
    %v332 = vunpack.c.l.b16 %v264
    %v333 = vunpack.c.l.b16 %v265
    %v334 = vunpack.c.l.b16 %v266
    %v335 = vunpack.c.l.b16 %v267
    %v336 = vunpack.c.l.b16 %v268
    %v337 = vpack.c.b16 %v306, %v305
    %v338 = vpack.c.b16 %v308, %v307
    %v339 = vpack.c.b16 %v310, %v309
    %v340 = vpack.c.b16 %v312, %v311
    %v341 = vpack.c.b16 %v314, %v313
    %v342 = vpack.c.b16 %v316, %v315
    %v343 = vpack.c.b16 %v318, %v317
    %v344 = vpack.c.b16 %v320, %v319
    %v345 = vpack.c.b16 %v322, %v321
    %v346 = vpack.c.b16 %v324, %v323
    %v347 = vpack.c.b16 %v326, %v325
    %v348 = vpack.c.b16 %v328, %v327
    %v349 = vpack.c.b16 %v330, %v329
    %v350 = vpack.c.b16 %v332, %v331
    %v351 = vpack.c.b16 %v334, %v333
    %v352 = vpack.c.b16 %v336, %v335
    %369 = vmatpush.bf16.msra.mxu0 %v344
    %370 = vmatpush.bf16.msra.mxu0 %v343
    %371 = vmatpush.bf16.msra.mxu0 %v342
    %372 = vmatpush.bf16.msra.mxu0 %v341
    %373 = vmatpush.bf16.msra.mxu0 %v340
    %374 = vmatpush.bf16.msra.mxu0 %v339
    %375 = vmatpush.bf16.msra.mxu0 %v338
    %376 = vmatpush.bf16.msra.mxu0 %v337
    %377 = vmatmul.bf16.gmra.mxu0 %v229
    %v378 = vpop.f32.mrf.mxu0
    %v379 = vadd.f32 %v271, %v378
    %v380 = vpop.f32.mrf.mxu0
    %v381 = vadd.f32 %v271, %v380
    %382 = vdwg.mxu0
    %383 = vmatpush.bf16.msra.mxu0 %v352
    %384 = vmatpush.bf16.msra.mxu0 %v351
    %385 = vmatpush.bf16.msra.mxu0 %v350
    %386 = vmatpush.bf16.msra.mxu0 %v349
    %387 = vmatpush.bf16.msra.mxu0 %v348
    %388 = vmatpush.bf16.msra.mxu0 %v347
    %389 = vmatpush.bf16.msra.mxu0 %v346
    %390 = vmatpush.bf16.msra.mxu0 %v345
    %391 = vmatmul.bf16.gmra.mxu0 %v235
    %v392 = vpop.f32.mrf.mxu0
    %v393 = vadd.f32 %v379, %v392
    %v394 = vpop.f32.mrf.mxu0
    %v395 = vadd.f32 %v381, %v394
    %396 = vdwg.mxu0
    %v397 = vmax.f32 %v393, 0.0
    %v398 = vmax.f32 %v395, 0.0
    %v399 = vperm.slane %v49, 0
    %vm400 = vcmp.eq.s32.totalorder %v51, %v399
    %v401 = vsel %vm400, 1, 0
    %v402 = vcvt.s32.f32 %v401
    %vm403 = vcmask 123904
    %v404 = vsel %vm403, %v402, 0.0
    %405 = vadd.xlane.f32.xlu0 %v404
    %v406 = vpop.xlane.xlu0 %405
    %v407 = vmax.f32 %v406, 1.0
    %v408 = vrcp.pop %v407
    %v409 = vpack.c.bf16 %v402, %v402
    %v410 = vpack.c.bf16 %v398, %v397
    %v412 = vsel %vm132, %v409, 0
    %414 = vmatpush.bf16.msra.mxu0 0
    %415 = vmatpush.bf16.msra.mxu0 0
    %416 = vmatpush.bf16.msra.mxu0 0
    %417 = vmatpush.bf16.msra.mxu0 0
    %418 = vmatpush.bf16.msra.mxu0 0
    %419 = vmatpush.bf16.msra.mxu0 0
    %420 = vmatpush.bf16.msra.mxu0 0
    %421 = vmatpush.bf16.msra.mxu0 %v410
    %422 = vmatmul.bf16.gmra.mxu0 %v412
    %v423 = vpop.f32.mrf.mxu0
    %v424 = vadd.f32 0.0, %v423
    %v425 = vpop.f32.mrf.mxu0
    %426 = vdwg.mxu0
    %v427 = vmul.f32 %v424, %v408
    %v428 = vpack.c.bf16 %v427, %v427
    %v429 = vld [vmem:[#allocation2] sm:$0xff]
    %v430 = vld [vmem:[#allocation2 + $0x8] sm:$0xff]
    %v431 = vld [vmem:[#allocation2 + $0x10] sm:$0xff]
    %v432 = vld [vmem:[#allocation2 + $0x18] sm:$0xff]
    %v433 = vld [vmem:[#allocation2 + $0x20] sm:$0xff]
    %v434 = vld [vmem:[#allocation2 + $0x28] sm:$0xff]
    %v435 = vld [vmem:[#allocation2 + $0x30] sm:$0xff]
    %v436 = vld [vmem:[#allocation2 + $0x38] sm:$0xff]
    %v437 = vld [vmem:[#allocation2 + $0x40] sm:$0xff]
    %v438 = vld [vmem:[#allocation2 + $0x48] sm:$0xff]
    %v439 = vld [vmem:[#allocation2 + $0x50] sm:$0xff]
    %v440 = vld [vmem:[#allocation2 + $0x58] sm:$0xff]
    %v441 = vld [vmem:[#allocation2 + $0x60] sm:$0xff]
    %v442 = vld [vmem:[#allocation2 + $0x68] sm:$0xff]
    %v443 = vld [vmem:[#allocation2 + $0x70] sm:$0xff]
    %v444 = vld [vmem:[#allocation2 + $0x78] sm:$0xff]
    %v445 = vld [vmem:[%s7 + $0x2] sm:$0x3]
    %v447 = vperm.slane %v445, 0
    %v448 = vperm.slane %v445, 1
    %v467 = vunpack.c.l.b16 %v429
    %v468 = vunpack.c.h.b16 %v429
    %v469 = vunpack.c.l.b16 %v430
    %v470 = vunpack.c.h.b16 %v430
    %v471 = vunpack.c.l.b16 %v431
    %v472 = vunpack.c.h.b16 %v431
    %v473 = vunpack.c.l.b16 %v432
    %v474 = vunpack.c.h.b16 %v432
    %v475 = vunpack.c.l.b16 %v433
    %v476 = vunpack.c.h.b16 %v433
    %v477 = vunpack.c.l.b16 %v434
    %v478 = vunpack.c.h.b16 %v434
    %v479 = vunpack.c.l.b16 %v435
    %v480 = vunpack.c.h.b16 %v435
    %v481 = vunpack.c.l.b16 %v436
    %v482 = vunpack.c.h.b16 %v436
    %v483 = vunpack.c.l.b16 %v437
    %v484 = vunpack.c.h.b16 %v437
    %v485 = vunpack.c.l.b16 %v438
    %v486 = vunpack.c.h.b16 %v438
    %v487 = vunpack.c.l.b16 %v439
    %v488 = vunpack.c.h.b16 %v439
    %v489 = vunpack.c.l.b16 %v440
    %v490 = vunpack.c.h.b16 %v440
    %v491 = vunpack.c.l.b16 %v441
    %v492 = vunpack.c.h.b16 %v441
    %v493 = vunpack.c.l.b16 %v442
    %v494 = vunpack.c.h.b16 %v442
    %v495 = vunpack.c.l.b16 %v443
    %v496 = vunpack.c.h.b16 %v443
    %v497 = vunpack.c.l.b16 %v444
    %v498 = vunpack.c.h.b16 %v444
    %v499 = vpack.c.b16 %v469, %v467
    %v500 = vpack.c.b16 %v470, %v468
    %v501 = vpack.c.b16 %v473, %v471
    %v502 = vpack.c.b16 %v474, %v472
    %v503 = vpack.c.b16 %v477, %v475
    %v504 = vpack.c.b16 %v478, %v476
    %v505 = vpack.c.b16 %v481, %v479
    %v506 = vpack.c.b16 %v482, %v480
    %v507 = vpack.c.b16 %v485, %v483
    %v508 = vpack.c.b16 %v486, %v484
    %v509 = vpack.c.b16 %v489, %v487
    %v510 = vpack.c.b16 %v490, %v488
    %v511 = vpack.c.b16 %v493, %v491
    %v512 = vpack.c.b16 %v494, %v492
    %v513 = vpack.c.b16 %v497, %v495
    %v514 = vpack.c.b16 %v498, %v496
    %531 = vmatpush.bf16.msra.mxu0 %v513
    %532 = vmatpush.bf16.msra.mxu0 %v511
    %533 = vmatpush.bf16.msra.mxu0 %v509
    %534 = vmatpush.bf16.msra.mxu0 %v507
    %535 = vmatpush.bf16.msra.mxu0 %v505
    %536 = vmatpush.bf16.msra.mxu0 %v503
    %537 = vmatpush.bf16.msra.mxu0 %v501
    %538 = vmatpush.bf16.msra.mxu0 %v499
    %539 = vmatmul.bf16.gmra.mxu0 %v428
    %v540 = vpop.f32.mrf.mxu0
    %v541 = vadd.f32 %v447, %v540
    %v542 = vpop.f32.mrf.mxu0
    %543 = vdwg.mxu0
    %544 = vmatpush.bf16.msra.mxu0 %v514
    %545 = vmatpush.bf16.msra.mxu0 %v512
    %546 = vmatpush.bf16.msra.mxu0 %v510
    %547 = vmatpush.bf16.msra.mxu0 %v508
    %548 = vmatpush.bf16.msra.mxu0 %v506
    %549 = vmatpush.bf16.msra.mxu0 %v504
    %550 = vmatpush.bf16.msra.mxu0 %v502
    %551 = vmatpush.bf16.msra.mxu0 %v500
    %552 = vmatmul.bf16.gmra.mxu0 %v428
    %v553 = vpop.f32.mrf.mxu0
    %v554 = vadd.f32 %v448, %v553
    %v555 = vpop.f32.mrf.mxu0
    %556 = vdwg.mxu0
    %v557 = vmax.f32 %v541, 0.0
    %v558 = vmax.f32 %v554, 0.0
    %v559 = vpack.c.bf16 %v557, %v557
    %v560 = vpack.c.bf16 %v558, %v558
    %v561 = vld [vmem:[%s6] sm:$0xf]
    %v562 = vld [vmem:[%s6 + $0x4] sm:$0xf]
    %v563 = vld [vmem:[%s6 + $0x8] sm:$0xf]
    %v564 = vld [vmem:[%s6 + $0xc] sm:$0xf]
    %v565 = vld [vmem:[%s6 + $0x10] sm:$0xf]
    %v566 = vld [vmem:[%s6 + $0x14] sm:$0xf]
    %v567 = vld [vmem:[%s6 + $0x18] sm:$0xf]
    %v568 = vld [vmem:[%s6 + $0x1c] sm:$0xf]
    %v569 = vld [vmem:[%s6 + $0x20] sm:$0xf]
    %v570 = vld [vmem:[%s6 + $0x24] sm:$0xf]
    %v571 = vld [vmem:[%s6 + $0x28] sm:$0xf]
    %v572 = vld [vmem:[%s6 + $0x2c] sm:$0xf]
    %v573 = vld [vmem:[%s6 + $0x30] sm:$0xf]
    %v574 = vld [vmem:[%s6 + $0x34] sm:$0xf]
    %v575 = vld [vmem:[%s6 + $0x38] sm:$0xf]
    %v576 = vld [vmem:[%s6 + $0x3c] sm:$0xf]
    %v577 = vld [vmem:[%s6 + $0x40] sm:$0xf]
    %v578 = vld [vmem:[%s6 + $0x44] sm:$0xf]
    %v579 = vld [vmem:[%s6 + $0x48] sm:$0xf]
    %v580 = vld [vmem:[%s6 + $0x4c] sm:$0xf]
    %v581 = vld [vmem:[%s6 + $0x50] sm:$0xf]
    %v582 = vld [vmem:[%s6 + $0x54] sm:$0xf]
    %v583 = vld [vmem:[%s6 + $0x58] sm:$0xf]
    %v584 = vld [vmem:[%s6 + $0x5c] sm:$0xf]
    %v585 = vld [vmem:[%s6 + $0x60] sm:$0xf]
    %v586 = vld [vmem:[%s6 + $0x64] sm:$0xf]
    %v587 = vld [vmem:[%s6 + $0x68] sm:$0xf]
    %v588 = vld [vmem:[%s6 + $0x6c] sm:$0xf]
    %v589 = vld [vmem:[%s6 + $0x70] sm:$0xf]
    %v590 = vld [vmem:[%s6 + $0x74] sm:$0xf]
    %v591 = vld [vmem:[%s6 + $0x78] sm:$0xf]
    %v592 = vld [vmem:[%s6 + $0x7c] sm:$0xf]
    %v593 = vld [vmem:[%s7 + $0x4] sm:$0x1]
    %v595 = vperm.slane %v593, 0
    %v629 = vunpack.c.l.b16 %v561
    %v630 = vunpack.c.l.b16 %v562
    %v631 = vunpack.c.l.b16 %v563
    %v632 = vunpack.c.l.b16 %v564
    %v633 = vunpack.c.l.b16 %v565
    %v634 = vunpack.c.l.b16 %v566
    %v635 = vunpack.c.l.b16 %v567
    %v636 = vunpack.c.l.b16 %v568
    %v637 = vunpack.c.l.b16 %v569
    %v638 = vunpack.c.l.b16 %v570
    %v639 = vunpack.c.l.b16 %v571
    %v640 = vunpack.c.l.b16 %v572
    %v641 = vunpack.c.l.b16 %v573
    %v642 = vunpack.c.l.b16 %v574
    %v643 = vunpack.c.l.b16 %v575
    %v644 = vunpack.c.l.b16 %v576
    %v645 = vunpack.c.l.b16 %v577
    %v646 = vunpack.c.l.b16 %v578
    %v647 = vunpack.c.l.b16 %v579
    %v648 = vunpack.c.l.b16 %v580
    %v649 = vunpack.c.l.b16 %v581
    %v650 = vunpack.c.l.b16 %v582
    %v651 = vunpack.c.l.b16 %v583
    %v652 = vunpack.c.l.b16 %v584
    %v653 = vunpack.c.l.b16 %v585
    %v654 = vunpack.c.l.b16 %v586
    %v655 = vunpack.c.l.b16 %v587
    %v656 = vunpack.c.l.b16 %v588
    %v657 = vunpack.c.l.b16 %v589
    %v658 = vunpack.c.l.b16 %v590
    %v659 = vunpack.c.l.b16 %v591
    %v660 = vunpack.c.l.b16 %v592
    %v661 = vpack.c.b16 %v630, %v629
    %v662 = vpack.c.b16 %v632, %v631
    %v663 = vpack.c.b16 %v634, %v633
    %v664 = vpack.c.b16 %v636, %v635
    %v665 = vpack.c.b16 %v638, %v637
    %v666 = vpack.c.b16 %v640, %v639
    %v667 = vpack.c.b16 %v642, %v641
    %v668 = vpack.c.b16 %v644, %v643
    %v669 = vpack.c.b16 %v646, %v645
    %v670 = vpack.c.b16 %v648, %v647
    %v671 = vpack.c.b16 %v650, %v649
    %v672 = vpack.c.b16 %v652, %v651
    %v673 = vpack.c.b16 %v654, %v653
    %v674 = vpack.c.b16 %v656, %v655
    %v675 = vpack.c.b16 %v658, %v657
    %v676 = vpack.c.b16 %v660, %v659
    %693 = vmatpush.bf16.msra.mxu0 %v668
    %694 = vmatpush.bf16.msra.mxu0 %v667
    %695 = vmatpush.bf16.msra.mxu0 %v666
    %696 = vmatpush.bf16.msra.mxu0 %v665
    %697 = vmatpush.bf16.msra.mxu0 %v664
    %698 = vmatpush.bf16.msra.mxu0 %v663
    %699 = vmatpush.bf16.msra.mxu0 %v662
    %700 = vmatpush.bf16.msra.mxu0 %v661
    %701 = vmatmul.bf16.gmra.mxu0 %v559
    %v702 = vpop.f32.mrf.mxu0
    %v703 = vadd.f32 %v595, %v702
    %v704 = vpop.f32.mrf.mxu0
    %705 = vdwg.mxu0
    %706 = vmatpush.bf16.msra.mxu0 %v676
    %707 = vmatpush.bf16.msra.mxu0 %v675
    %708 = vmatpush.bf16.msra.mxu0 %v674
    %709 = vmatpush.bf16.msra.mxu0 %v673
    %710 = vmatpush.bf16.msra.mxu0 %v672
    %711 = vmatpush.bf16.msra.mxu0 %v671
    %712 = vmatpush.bf16.msra.mxu0 %v670
    %713 = vmatpush.bf16.msra.mxu0 %v669
    %714 = vmatmul.bf16.gmra.mxu0 %v560
    %v715 = vpop.f32.mrf.mxu0
    %v716 = vadd.f32 %v703, %v715
    %v717 = vpop.f32.mrf.mxu0
    %718 = vdwg.mxu0
    %vm719 = vcmask 9216
    %720 = vst.msk [vmem:[#allocation5] sm:$0x3] %vm719, %v716
    // Predicated region
    $region38: #{graphsst2_forward.1} parent=1 // pred_check
      _
    $region39: #{graphsst2_forward.1} parent=1 // pred_check_branch
      %722 = sbr.rel (0) target = $region41
    $region40: #{graphsst2_forward.1} parent=1 // pred_region
      %724 = vsyncadd [#allocation4], 0
      %s726 = sshll.u32 [#allocation5], 4
      %s727 = int_to_ptr.vmem [resolvable:$true] %s726
      %s728 = sshll.u32 %s8, 4
      %s729 = int_to_ptr.hbm [resolvable:$true] %s728
      %731 = dma.vmem_to_hbm [thread:$0]  %s727, 32, %s729, [#allocation4]
    $region41: #{graphsst2_forward.1} parent=1 // pred_fallthru
      _
    // Predicated region
    $region42: #{graphsst2_forward.1} parent=1 // pred_check
      _
    $region43: #{graphsst2_forward.1} parent=1 // pred_check_branch
      %733 = sbr.rel (0) target = $region45
    $region44: #{graphsst2_forward.1} parent=1 // pred_region
      %735 = dma.done [#allocation4], 32
    $region45: #{graphsst2_forward.1} parent=1 // pred_fallthru
      _
    %736 = vsyncpa [#allocation3], 1
    %737 = vsyncpa [#allocation4], 1

</llo_original>
